<compile_context>
chip_gen: v6e
topology: v6e:2x2x1
jax: 0.10.0
libtpu: 0.0.40
codegen_flags: <defaults>
</compile_context>

<pallas_src>
from functools import partial
from math import factorial

import numpy as np
import jax
import jax.numpy as jnp
from jax.experimental import pallas as pl
from jax.experimental.pallas import tpu as pltpu


PACK = 128  # lane-packed width (one full vreg lane dimension / MXU native)


def _round_up(x: int, m: int) -> int:
    return ((x + m - 1) // m) * m


def make_mk_buffers(dim: int):
    """Deterministic construction of M and invM exactly as in _MK.__init__ (float64)."""
    M = np.zeros((dim, dim), dtype=np.float64)
    for i in range(dim):
        M[i] = (np.arange(dim) - (dim - 1) // 2) ** i / factorial(i)
    invM = np.linalg.inv(M)
    return M, invM


def make_packed_rhs(M: np.ndarray, invM: np.ndarray, pack: int = PACK):
    """Build the lane-dense fused RHS: [pack, 2*pack] = [ kron(I_G, M) | kron(I_G, invM) ].

    G = pack // dim groups of `dim` input channels are packed onto the lane axis;
    the block-diagonal kron applies M (resp. invM) independently to each group.
    Zero rows/cols pad G*dim up to `pack`, so padded input lanes contribute nothing.
    """
    dim = M.shape[0]
    assert 1 <= dim <= pack, "dim must be in [1, 128] for the lane-packed layout"
    g = pack // dim
    gw = g * dim
    Mb = np.kron(np.eye(g), M)        # [gw, gw]
    invMb = np.kron(np.eye(g), invM)  # [gw, gw]
    rhs = np.zeros((pack, 2 * pack), dtype=np.float32)
    rhs[:gw, :gw] = Mb
    rhs[:gw, pack:pack + gw] = invMb
    return jnp.asarray(rhs, dtype=jnp.float32)


def _mk_kernel(x_ref, rhs_ref, y_ref):
    # x_ref: [TILE, 128]   rhs_ref: [128, 256]   y_ref: [TILE, 256]
    # Single fused MXU contraction producing both (x @ M) and (x @ invM).
    y_ref[...] = jnp.dot(x_ref[...], rhs_ref[...],
                         preferred_element_type=jnp.float32)


@partial(jax.jit, static_argnums=(2,), static_argnames=("tile_rows",))
def mk_transform(x, rhs_packed, dim: int, *, tile_rows: int = 2048):
    """Apply M and invM along the last axis of x via a single Pallas kernel.

    x: [..., dim]  ->  (x @ M, x @ invM), each [..., dim]
    """
    orig_shape = x.shape
    assert orig_shape[-1] == dim
    pack = rhs_packed.shape[0]
    g = pack // dim           # rows packed per lane-dense row
    gw = g * dim              # used lanes (<= pack)

    n = int(np.prod(orig_shape[:-1])) if len(orig_shape) > 1 else 1

    x2 = x.reshape(n, dim)
    if x2.dtype != jnp.float32:   # guard the cast: no copy if already f32
        x2 = x2.astype(jnp.float32)

    # Packed-row count; pad so rows are a multiple of the tile (tail handling).
    rows = pl.cdiv(n, g)
    tile = min(tile_rows, _round_up(max(rows, 1), 8))
    rows_padded = _round_up(rows, tile)
    n_padded = rows_padded * g

    if n_padded != n:
        x2 = jnp.pad(x2, ((0, n_padded - n), (0, 0)))
    xp = x2.reshape(rows_padded, gw)          # row-major: 'g' consecutive rows per packed row
    if gw != pack:
        xp = jnp.pad(xp, ((0, 0), (0, pack - gw)))   # padded lanes hit zero RHS rows

    grid = (rows_padded // tile,)
    y = pl.pallas_call(
        _mk_kernel,
        out_shape=jax.ShapeDtypeStruct((rows_padded, 2 * pack), jnp.float32),
        grid=grid,
        in_specs=[
            pl.BlockSpec((tile, pack), lambda i: (i, 0)),
            pl.BlockSpec((pack, 2 * pack), lambda i: (0, 0)),  # resident RHS
        ],
        out_specs=pl.BlockSpec((tile, 2 * pack), lambda i: (i, 0)),
        compiler_params=pltpu.CompilerParams(
            dimension_semantics=("parallel",),   # shards rows across v7x's 2 TCs
        ),
    )(xp, rhs_packed)

    ym = y[:, :gw].reshape(n_padded, dim)[:n].reshape(orig_shape)
    yinv = y[:, pack:pack + gw].reshape(n_padded, dim)[:n].reshape(orig_shape)
    return ym, yinv


if __name__ == "__main__":
    dim = 5            # typical finite-difference stencil size in PDE-Net
    batch, seq = 2, 16

    M64, invM64 = make_mk_buffers(dim)
    rhs = make_packed_rhs(M64, invM64)
    M = jnp.asarray(M64, dtype=jnp.float32)
    invM = jnp.asarray(invM64, dtype=jnp.float32)

    key = jax.random.PRNGKey(0)
    x = jax.random.normal(key, (batch, seq, dim), dtype=jnp.float32)

    ym, yinv = mk_transform(x, rhs, dim)
    ym = jax.block_until_ready(ym)
    yinv = jax.block_until_ready(yinv)

    # Reference check against plain JAX.
    ym_ref = jnp.einsum("bsd,de->bse", x, M)
    yinv_ref = jnp.einsum("bsd,de->bse", x, invM)
    assert jnp.allclose(ym, ym_ref, atol=1e-4, rtol=1e-4)
    assert jnp.allclose(yinv, yinv_ref, atol=1e-4, rtol=1e-4)

    # Sanity: M o invM round-trips (fine for dim=5; ill-conditioned for dim >~ 9 in f32).
    rt_m, _ = mk_transform(yinv, rhs, dim)
    rt_m = jax.block_until_ready(rt_m)
    assert jnp.allclose(rt_m, x, atol=1e-3, rtol=1e-3)
    assert jnp.allclose(jnp.einsum("bsd,de->bse", yinv, M), x, atol=1e-3, rtol=1e-3)

    print("KERNEL_OK")
</pallas_src>

<mosaic_0001>
module attributes {stable_mosaic.version = 11 : i64} {
  func.func @_mk_kernel(%arg0: i32, %arg1: memref<8x128xf32, #tpu.memory_space<vmem>>, %arg2: memref<128x256xf32, #tpu.memory_space<vmem>>, %arg3: memref<8x256xf32, #tpu.memory_space<vmem>>) attributes {dimension_semantics = [#tpu.dimension_semantics<parallel>], iteration_bounds = array<i64: 1>, scalar_prefetch = 0 : i64, scratch_operands = 0 : i64, tpu.core_type = #tpu.core_type<tc>, window_params = [{transform_indices = @transform_0, window_bounds = array<i64: 8, 128>}, {pipeline_mode = #tpu.pipeline_mode<synchronous>, transform_indices = @transform_1, window_bounds = array<i64: 128, 256>}, {transform_indices = @transform_2, window_bounds = array<i64: 8, 256>}]} {
    %c0 = arith.constant 0 : index
    %c0_0 = arith.constant 0 : index
    %0 = vector.load %arg1[%c0, %c0_0] : memref<8x128xf32, #tpu.memory_space<vmem>>, vector<8x128xf32>
    %c0_1 = arith.constant 0 : index
    %c0_2 = arith.constant 0 : index
    %1 = vector.load %arg2[%c0_1, %c0_2] : memref<128x256xf32, #tpu.memory_space<vmem>>, vector<128x256xf32>
    %cst = arith.constant dense<0.000000e+00> : vector<8x256xf32>
    %2 = tpu.matmul %0, %1, %cst {dimension_numbers = #tpu.dot_dimension_numbers<[1], [0], [0], [1], [0, 0, 1, 1], [], []>} : vector<8x128xf32>, vector<128x256xf32>, vector<8x256xf32> -> vector<8x256xf32>
    %c0_3 = arith.constant 0 : index
    %c0_4 = arith.constant 0 : index
    %3 = vector.load %arg3[%c0_3, %c0_4] : memref<8x256xf32, #tpu.memory_space<vmem>>, vector<8x256xf32>
    tpu.vector_store %arg3[%c0_3, %c0_4], %2 {strides = array<i32>} : memref<8x256xf32, #tpu.memory_space<vmem>>, vector<8x256xf32>,
    return
  }
  func.func @transform_0(%arg0: i32) -> (i32, i32) {
    %c0_i32 = arith.constant 0 : i32
    %c0_i32_0 = arith.constant 0 : i32
    return %arg0, %c0_i32 : i32, i32
  }
  func.func @transform_1(%arg0: i32) -> (i32, i32) {
    %c0_i32 = arith.constant 0 : i32
    %c0_i32_0 = arith.constant 0 : i32
    %c0_i32_1 = arith.constant 0 : i32
    return %c0_i32, %c0_i32_0 : i32, i32
  }
  func.func @transform_2(%arg0: i32) -> (i32, i32) {
    %c0_i32 = arith.constant 0 : i32
    %c0_i32_0 = arith.constant 0 : i32
    return %arg0, %c0_i32 : i32, i32
  }
}

</mosaic_0001>

<llo_original>
// kernel: mk_transform.1
$region0: #{mk_transform.1}
  #allocation0 [shape = 'u32[]', space=smem, size = 0x4, offset = 0x4, fixed_abs, tag = 'smem constant byte address 0x4 - core index']
  #allocation1 [shape = 'u32[144,128]{1,0:T(1,128)}', space=vmem, size = 0x12000, scoped, tag = 'internal scratch']
  %s0 = inlined_call_operand.vmem [shape: f32[8,128], index: 0, kind: input, shape index: {}]
  %s1 = inlined_call_operand.vmem [shape: f32[128,256], index: 1, kind: input, shape index: {}]
  %s2 = inlined_call_operand.vmem [shape: f32[8,256], index: 2, kind: output, shape index: {}]
  %s3 = sld [smem:[#allocation0]]
  $region18: #{mk_transform.1} parent=0
    _
  %s5 = ssub.s32 1, %s3
  %s6 = scalar_select 0, %s5, %s3
  // Predicated region
  $region2: #{mk_transform.1} parent=0 // pred_check
    _
  $region3: #{mk_transform.1} parent=0 // pred_check_branch
    %8 = sbr.rel (0) target = $region5
  $region4: #{mk_transform.1} parent=0 // pred_region
    _
  $region5: #{mk_transform.1} parent=0 // pred_fallthru
    _
  // Predicated region
  $region6: #{mk_transform.1} parent=0 // pred_check
    _
  $region7: #{mk_transform.1} parent=0 // pred_check_branch
    %10 = sbr.rel (0) target = $region9
  $region8: #{mk_transform.1} parent=0 // pred_region
    _
  $region9: #{mk_transform.1} parent=0 // pred_fallthru
    _
  %v11 = vld [vmem:[%s0] sm:$0xff]
  %v12 = vld [vmem:[%s1] sm:$0xff]
  %v13 = vld [vmem:[%s1 + $0x8] sm:$0xff]
  %v14 = vld [vmem:[%s1 + $0x10] sm:$0xff]
  %v15 = vld [vmem:[%s1 + $0x18] sm:$0xff]
  %v16 = vld [vmem:[%s1 + $0x20] sm:$0xff]
  %v17 = vld [vmem:[%s1 + $0x28] sm:$0xff]
  %v18 = vld [vmem:[%s1 + $0x30] sm:$0xff]
  %v19 = vld [vmem:[%s1 + $0x38] sm:$0xff]
  %v20 = vld [vmem:[%s1 + $0x40] sm:$0xff]
  %v21 = vld [vmem:[%s1 + $0x48] sm:$0xff]
  %v22 = vld [vmem:[%s1 + $0x50] sm:$0xff]
  %v23 = vld [vmem:[%s1 + $0x58] sm:$0xff]
  %v24 = vld [vmem:[%s1 + $0x60] sm:$0xff]
  %v25 = vld [vmem:[%s1 + $0x68] sm:$0xff]
  %v26 = vld [vmem:[%s1 + $0x70] sm:$0xff]
  %v27 = vld [vmem:[%s1 + $0x78] sm:$0xff]
  %v28 = vld [vmem:[%s1 + $0x80] sm:$0xff]
  %v29 = vld [vmem:[%s1 + $0x88] sm:$0xff]
  %v30 = vld [vmem:[%s1 + $0x90] sm:$0xff]
  %v31 = vld [vmem:[%s1 + $0x98] sm:$0xff]
  %v32 = vld [vmem:[%s1 + $0xa0] sm:$0xff]
  %v33 = vld [vmem:[%s1 + $0xa8] sm:$0xff]
  %v34 = vld [vmem:[%s1 + $0xb0] sm:$0xff]
  %v35 = vld [vmem:[%s1 + $0xb8] sm:$0xff]
  %v36 = vld [vmem:[%s1 + $0xc0] sm:$0xff]
  %v37 = vld [vmem:[%s1 + $0xc8] sm:$0xff]
  %v38 = vld [vmem:[%s1 + $0xd0] sm:$0xff]
  %v39 = vld [vmem:[%s1 + $0xd8] sm:$0xff]
  %v40 = vld [vmem:[%s1 + $0xe0] sm:$0xff]
  %v41 = vld [vmem:[%s1 + $0xe8] sm:$0xff]
  %v42 = vld [vmem:[%s1 + $0xf0] sm:$0xff]
  %v43 = vld [vmem:[%s1 + $0xf8] sm:$0xff]
  %44 = vmatprep.subr.mxu0 %v43
  %45 = vmatpush1.msra.mxu0 %v42
  %46 = vmatprep.subr.mxu0 %v41
  %47 = vmatpush1.msra.mxu0 %v40
  %48 = vmatprep.subr.mxu0 %v39
  %49 = vmatpush1.msra.mxu0 %v38
  %50 = vmatprep.subr.mxu0 %v37
  %51 = vmatpush1.msra.mxu0 %v36
  %52 = vmatprep.subr.mxu0 %v35
  %53 = vmatpush1.msra.mxu0 %v34
  %54 = vmatprep.subr.mxu0 %v33
  %55 = vmatpush1.msra.mxu0 %v32
  %56 = vmatprep.subr.mxu0 %v31
  %57 = vmatpush1.msra.mxu0 %v30
  %58 = vmatprep.subr.mxu0 %v29
  %59 = vmatpush1.msra.mxu0 %v28
  %60 = vmatprep.subr.mxu0 %v27
  %61 = vmatpush1.msra.mxu0 %v26
  %62 = vmatprep.subr.mxu0 %v25
  %63 = vmatpush1.msra.mxu0 %v24
  %64 = vmatprep.subr.mxu0 %v23
  %65 = vmatpush1.msra.mxu0 %v22
  %66 = vmatprep.subr.mxu0 %v21
  %67 = vmatpush1.msra.mxu0 %v20
  %68 = vmatprep.subr.mxu0 %v19
  %69 = vmatpush1.msra.mxu0 %v18
  %70 = vmatprep.subr.mxu0 %v17
  %71 = vmatpush1.msra.mxu0 %v16
  %72 = vmatprep.subr.mxu0 %v15
  %73 = vmatpush1.msra.mxu0 %v14
  %74 = vmatprep.subr.mxu0 %v13
  %75 = vmatpush1.msra.mxu0 %v12
  %76 = vmatprep.subr.mxu0 0.0
  %77 = vmatpush2.msra.mxu0 0.0
  %78 = vmatprep.subr.mxu0 0.0
  %79 = vmatpush2.msra.mxu0 0.0
  %80 = vmatprep.subr.mxu0 0.0
  %81 = vmatpush2.msra.mxu0 0.0
  %82 = vmatprep.subr.mxu0 0.0
  %83 = vmatpush2.msra.mxu0 0.0
  %84 = vmatprep.subr.mxu0 0.0
  %85 = vmatpush2.msra.mxu0 0.0
  %86 = vmatprep.subr.mxu0 0.0
  %87 = vmatpush2.msra.mxu0 0.0
  %88 = vmatprep.subr.mxu0 0.0
  %89 = vmatpush2.msra.mxu0 0.0
  %90 = vmatprep.subr.mxu0 0.0
  %91 = vmatpush2.msra.mxu0 0.0
  %92 = vmatprep.subr.mxu0 0.0
  %93 = vmatpush2.msra.mxu0 0.0
  %94 = vmatprep.subr.mxu0 0.0
  %95 = vmatpush2.msra.mxu0 0.0
  %96 = vmatprep.subr.mxu0 0.0
  %97 = vmatpush2.msra.mxu0 0.0
  %98 = vmatprep.subr.mxu0 0.0
  %99 = vmatpush2.msra.mxu0 0.0
  %100 = vmatprep.subr.mxu0 0.0
  %101 = vmatpush2.msra.mxu0 0.0
  %102 = vmatprep.subr.mxu0 0.0
  %103 = vmatpush2.msra.mxu0 0.0
  %104 = vmatprep.subr.mxu0 0.0
  %105 = vmatpush2.msra.mxu0 0.0
  %106 = vmatprep.subr.mxu0 0.0
  %107 = vmatpush2.msra.mxu0 0.0
  %108 = vmatprep.mubr.f32.mxu0 0.0
  %109 = vmatmul.mubr.f32.gmra.mxu0 %v11
  %v110 = vpop.f32.mrf.mxu0
  %v111 = vadd.f32 0.0, %v110
  %v112 = vpop.f32.mrf.mxu0
  %v113 = vadd.f32 0.0, %v112
  %114 = vdwg.mxu0
  %115 = vst [vmem:[%s2] sm:$0xff] %v111
  %116 = vst [vmem:[%s2 + $0x8] sm:$0xff] %v113
  // Predicated region
  $region10: #{mk_transform.1} parent=0 // pred_check
    _
  $region11: #{mk_transform.1} parent=0 // pred_check_branch
    %118 = sbr.rel (0) target = $region13
  $region12: #{mk_transform.1} parent=0 // pred_region
    _
  $region13: #{mk_transform.1} parent=0 // pred_fallthru
    _
  // Predicated region
  $region14: #{mk_transform.1} parent=0 // pred_check
    _
  $region15: #{mk_transform.1} parent=0 // pred_check_branch
    %120 = sbr.rel (0) target = $region17
  $region16: #{mk_transform.1} parent=0 // pred_region
    _
  $region17: #{mk_transform.1} parent=0 // pred_fallthru
    _

</llo_original>
